<compile_context>
chip_gen: v7x
topology: tpu7x:2x2x1
jax: 0.10.0
libtpu: 0.0.40
codegen_flags: <defaults>
</compile_context>

<pallas_src>
import functools

import jax
import jax.numpy as jnp
from jax.experimental import pallas as pl
from jax.experimental.pallas import tpu as pltpu


def _round_up(x: int, m: int) -> int:
    return (x + m - 1) // m * m


def _tpu_generation() -> int:
    """Best-effort TPU generation from device_kind; 0 if unknown."""
    try:
        kind = jax.devices()[0].device_kind.lower()
    except Exception:
        return 0
    for g in (7, 6, 5, 4, 3, 2):
        if f"v{g}" in kind or f"tpu{g}" in kind:
            return g
    return 0


def _pick_tile_n(n: int, c: int, in_pair_itemsize: int, gen: int,
                 num_slices: int) -> int:
    """Largest row tile whose pipeline buffers + f32 temps fit the VMEM plan.

    VMEM used per row ~= 2 (double-buffer) * C * (x_item + t_item)      [inputs]
                        + ~6 * C * 4                                    [f32 temps]
    Budgets stay inside the default scoped-VMEM limit on every generation
    (v5e 16 MiB, v6e 32 MiB, v7x 32 MiB default / 64 MiB physical).
    """
    budget = (24 if gen >= 6 else 10) * 1024 * 1024
    per_row = c * (2 * in_pair_itemsize + 6 * 4)
    rows = budget // max(per_row, 1)
    rows = int(max(16, min(rows, 1024)))
    rows = max(16, (rows // 16) * 16)
    if num_slices == 1 and n <= rows:
        # Single tile covering the whole array: "block == full dim" is always a
        # legal block shape, avoids masking and partial blocks entirely.
        return n
    tile = min(rows, _round_up(pl.cdiv(n, num_slices), 16))
    return max(16, (tile // 16) * 16)


def _coref_loss_kernel(x_ref, t_ref, out_ref, nlml_acc, bce_acc, *,
                       tile_n: int, tiles_per_slice: int, n_valid: int,
                       needs_mask: bool, exp_dtype):
    i = pl.program_id(1)   # reduction step along the mention axis

    # Zero the per-slice row accumulators at the first inner step.
    @pl.when(i == 0)
    def _():
        nlml_acc[...] = jnp.zeros_like(nlml_acc)
        bce_acc[...] = jnp.zeros_like(bce_acc)

    x = x_ref[...].astype(jnp.float32)     # [tile_n, C]
    t = t_ref[...].astype(jnp.float32)     # [tile_n, C]

    # ---------------- NLML: lse(all) - lse(gold), each with its own row max ---
    m_all = jnp.max(x, axis=1, keepdims=True)                    # [tile_n, 1]
    e_all = jnp.exp((x - m_all).astype(exp_dtype)).astype(jnp.float32)
    lse_all = m_all + jnp.log(jnp.sum(e_all, axis=1, keepdims=True))

    neg_big = jnp.float32(-1e30)                                 # finite sentinel
    gold = t > 0.0
    m_gold = jnp.max(jnp.where(gold, x, neg_big), axis=1, keepdims=True)
    e_gold = jnp.where(
        gold,
        jnp.exp((x - m_gold).astype(exp_dtype)).astype(jnp.float32),
        0.0)
    lse_gold = m_gold + jnp.log(jnp.sum(t * e_gold, axis=1, keepdims=True))
    nlml_row = lse_all - lse_gold                                # [tile_n, 1]

    # ---------------- BCE-with-logits on clamped logits -----------------------
    xc = jnp.clip(x, -50.0, 50.0)
    e_neg = jnp.exp((-jnp.abs(xc)).astype(exp_dtype)).astype(jnp.float32)
    bce_elem = jnp.maximum(xc, 0.0) - xc * t + jnp.log1p(e_neg)
    bce_row = jnp.sum(bce_elem, axis=1, keepdims=True)           # [tile_n, 1]

    if needs_mask:
        # Only compiled in when the grid can visit rows >= n_valid (ragged last
        # tile or a duplicated clamped tile); operates on [tile_n, 1] vectors.
        p = pl.program_id(0)
        row0 = (p * tiles_per_slice + i) * tile_n
        row_ids = row0 + jax.lax.broadcasted_iota(jnp.int32, (tile_n, 1), 0)
        valid = row_ids < n_valid
        nlml_row = jnp.where(valid, nlml_row, 0.0)
        bce_row = jnp.where(valid, bce_row, 0.0)

    nlml_acc[...] += nlml_row
    bce_acc[...] += bce_row

    # Final cross-row reduce + SMEM write only once per slice.
    @pl.when(i == pl.num_programs(1) - 1)
    def _():
        out_ref[0, 0] = jnp.sum(nlml_acc[...])
        out_ref[0, 1] = jnp.sum(bce_acc[...])


def coref_loss(input_: jax.Array, target: jax.Array, bce_weight: float,
               *, max_tile_n: int | None = None) -> jax.Array:
    """Pallas implementation of CorefLoss.forward (returns a scalar f32)."""
    assert 0.0 <= bce_weight <= 1.0
    assert input_.shape == target.shape and input_.ndim == 2
    n, c = input_.shape

    gen = _tpu_generation()
    num_slices = 2 if gen >= 7 else 1          # real 2-TC split only on v7x
    pair_itemsize = input_.dtype.itemsize + target.dtype.itemsize
    tile_n = _pick_tile_n(n, c, pair_itemsize, gen, num_slices)
    if max_tile_n is not None:                 # test hook for the multi-tile path
        tile_n = max(16, min(tile_n, (max_tile_n // 16) * 16))

    total_tiles = pl.cdiv(n, tile_n)
    tiles_per_slice = pl.cdiv(total_tiles, num_slices)
    grid_tiles = num_slices * tiles_per_slice
    needs_mask = (n % tile_n != 0) or (grid_tiles != total_tiles)

    # bf16 EUP path only where the hardware supports it and inputs are bf16.
    exp_dtype = (jnp.bfloat16
                 if (gen >= 6 and input_.dtype == jnp.bfloat16)
                 else jnp.float32)

    kernel = functools.partial(
        _coref_loss_kernel,
        tile_n=tile_n, tiles_per_slice=tiles_per_slice, n_valid=n,
        needs_mask=needs_mask, exp_dtype=exp_dtype)

    if grid_tiles == total_tiles:
        in_map = lambda p, i: (p * tiles_per_slice + i, 0)
    else:
        last_block = total_tiles - 1           # clamp duplicate tiles (masked anyway)
        in_map = lambda p, i: (jnp.minimum(p * tiles_per_slice + i, last_block), 0)

    if gen >= 7:
        dims = (pltpu.CORE_PARALLEL, pltpu.ARBITRARY)
    else:
        dims = (pltpu.ARBITRARY, pltpu.ARBITRARY)

    cost = pl.CostEstimate(
        flops=14 * n * c,
        transcendentals=4 * n * c,
        bytes_accessed=n * c * pair_itemsize + num_slices * 2 * 4)

    # parts[p] = [sum_rows(lse_all - lse_gold), sum_elems(bce)] for slice p.
    parts = pl.pallas_call(
        kernel,
        out_shape=jax.ShapeDtypeStruct((num_slices, 2), jnp.float32),
        grid=(num_slices, tiles_per_slice),
        in_specs=[
            pl.BlockSpec((tile_n, c), in_map),
            pl.BlockSpec((tile_n, c), in_map),
        ],
        out_specs=pl.BlockSpec((1, 2), lambda p, i: (p, 0),
                               memory_space=pltpu.SMEM),
        scratch_shapes=[pltpu.VMEM((tile_n, 1), jnp.float32),
                        pltpu.VMEM((tile_n, 1), jnp.float32)],
        compiler_params=pltpu.CompilerParams(dimension_semantics=dims),
        cost_estimate=cost,
    )(input_, target)

    nlml = jnp.sum(parts[:, 0]) / jnp.float32(n)
    bce = jnp.sum(parts[:, 1]) / jnp.float32(n * c)
    return nlml + jnp.float32(bce_weight) * bce


def _reference_loss(x, t, bce_weight):
    """Pure-JAX reference (mirrors the PyTorch module) for correctness checks."""
    gold = jax.scipy.special.logsumexp(x + jnp.log(t), axis=1)
    lse = jax.scipy.special.logsumexp(x, axis=1)
    nlml = jnp.mean(lse - gold)
    xc = jnp.clip(x, -50.0, 50.0)
    bce = jnp.mean(jnp.maximum(xc, 0.0) - xc * t + jnp.log1p(jnp.exp(-jnp.abs(xc))))
    return nlml + bce_weight * bce


if __name__ == "__main__":
    # CorefLoss has a single hyperparameter (bce_weight); no learned weights.
    BCE_WEIGHT = 0.5

    key = jax.random.PRNGKey(0)
    k_x, k_t = jax.random.split(key)

    # Small [n_mentions, n_candidates] matrix.
    N, C = 16, 128
    x = jax.random.normal(k_x, (N, C), dtype=jnp.float32) * 3.0
    t = (jax.random.uniform(k_t, (N, C)) < 0.2).astype(jnp.float32)
    t = t.at[:, 0].set(1.0)   # dummy antecedent: at least one positive per row

    loss = jax.block_until_ready(coref_loss(x, t, BCE_WEIGHT))
    ref = _reference_loss(x, t, BCE_WEIGHT)
    assert jnp.allclose(loss, ref, rtol=1e-5, atol=1e-5), (loss, ref)

    # bf16 inputs: ~2x less HBM traffic; exps run in bf16 on v6e/v7x EUP.
    loss_bf16 = jax.block_until_ready(
        coref_loss(x.astype(jnp.bfloat16), t.astype(jnp.bfloat16), BCE_WEIGHT))
    ref_bf16 = _reference_loss(x.astype(jnp.bfloat16).astype(jnp.float32), t, BCE_WEIGHT)
    assert jnp.allclose(loss_bf16, ref_bf16, rtol=3e-2, atol=3e-2), (loss_bf16, ref_bf16)

    # Ragged N, no wrapper-side padding: default (single full tile) and forced
    # multi-tile path (exercises the accumulator + row-mask handling).
    N2, C2 = 100, 256
    x2 = jax.random.normal(k_x, (N2, C2), dtype=jnp.float32)
    t2 = (jax.random.uniform(k_t, (N2, C2)) < 0.1).astype(jnp.float32)
    t2 = t2.at[:, 0].set(1.0)
    ref2 = _reference_loss(x2, t2, BCE_WEIGHT)
    loss2 = jax.block_until_ready(coref_loss(x2, t2, BCE_WEIGHT))
    assert jnp.allclose(loss2, ref2, rtol=1e-5, atol=1e-5), (loss2, ref2)
    loss2b = jax.block_until_ready(coref_loss(x2, t2, BCE_WEIGHT, max_tile_n=32))
    assert jnp.allclose(loss2b, ref2, rtol=1e-5, atol=1e-5), (loss2b, ref2)

    # Robustness: gold logits far below the row max must not underflow to +inf.
    x3 = jax.random.normal(k_x, (N, C), dtype=jnp.float32)
    x3 = x3.at[0, 64].set(200.0)                       # huge non-gold logit
    t3 = jnp.zeros((N, C), jnp.float32).at[:, 0].set(1.0)
    loss3 = jax.block_until_ready(coref_loss(x3, t3, BCE_WEIGHT))
    ref3 = _reference_loss(x3, t3, BCE_WEIGHT)
    assert jnp.isfinite(loss3), loss3
    assert jnp.allclose(loss3, ref3, rtol=1e-5, atol=1e-5), (loss3, ref3)

    print("KERNEL_OK")
</pallas_src>

<mosaic_0001>
module attributes {stable_mosaic.version = 11 : i64} {
  func.func @_coref_loss_kernel(%arg0: i32, %arg1: i32, %arg2: memref<16x128xf32, #tpu.memory_space<vmem>>, %arg3: memref<16x128xf32, #tpu.memory_space<vmem>>, %arg4: memref<1x2xf32, #tpu.memory_space<smem>>, %arg5: memref<16x1xf32, #tpu.memory_space<vmem>>, %arg6: memref<16x1xf32, #tpu.memory_space<vmem>>) attributes {dimension_semantics = [#tpu.dimension_semantics<arbitrary>, #tpu.dimension_semantics<arbitrary>], iteration_bounds = array<i64: 1, 1>, scalar_prefetch = 0 : i64, scratch_operands = 2 : i64, tpu.core_type = #tpu.core_type<tc>, window_params = [{transform_indices = @transform_0, window_bounds = array<i64: 16, 128>}, {transform_indices = @transform_1, window_bounds = array<i64: 16, 128>}, {transform_indices = @transform_2, window_bounds = array<i64: 1, 2>}]} {
    %c0_i32 = arith.constant 0 : i32
    %0 = arith.cmpi eq, %arg1, %c0_i32 : i32
    %1 = arith.extui %0 : i1 to i32
    %c0_i32_0 = arith.constant 0 : i32
    %2 = arith.cmpi ne, %1, %c0_i32_0 : i32
    scf.if %2 {
      %cst_25 = arith.constant 0.000000e+00 : f32
      %56 = vector.broadcast %cst_25 : f32 to vector<16x1xf32>
      %c0_26 = arith.constant 0 : index
      %c0_27 = arith.constant 0 : index
      %57 = vector.load %arg5[%c0_26, %c0_27] : memref<16x1xf32, #tpu.memory_space<vmem>>, vector<16x1xf32>
      tpu.vector_store %arg5[%c0_26, %c0_27], %56 {strides = array<i32>} : memref<16x1xf32, #tpu.memory_space<vmem>>, vector<16x1xf32>,
      %cst_28 = arith.constant 0.000000e+00 : f32
      %58 = vector.broadcast %cst_28 : f32 to vector<16x1xf32>
      %c0_29 = arith.constant 0 : index
      %c0_30 = arith.constant 0 : index
      %59 = vector.load %arg6[%c0_29, %c0_30] : memref<16x1xf32, #tpu.memory_space<vmem>>, vector<16x1xf32>
      tpu.vector_store %arg6[%c0_29, %c0_30], %58 {strides = array<i32>} : memref<16x1xf32, #tpu.memory_space<vmem>>, vector<16x1xf32>,
    } else {
    }
    %c0 = arith.constant 0 : index
    %c0_1 = arith.constant 0 : index
    %3 = vector.load %arg2[%c0, %c0_1] : memref<16x128xf32, #tpu.memory_space<vmem>>, vector<16x128xf32>
    %c0_2 = arith.constant 0 : index
    %c0_3 = arith.constant 0 : index
    %4 = vector.load %arg3[%c0_2, %c0_3] : memref<16x128xf32, #tpu.memory_space<vmem>>, vector<16x128xf32>
    %cst = arith.constant dense<0xFF800000> : vector<16xf32>
    %5 = vector.multi_reduction <maximumf>, %3, %cst [1] : vector<16x128xf32> to vector<16xf32>
    %6 = vector.shape_cast %5 : vector<16xf32> to vector<16x1xf32>
    %7 = vector.broadcast %6 : vector<16x1xf32> to vector<16x128xf32>
    %8 = arith.subf %3, %7 : vector<16x128xf32>
    %9 = math.exp %8 : vector<16x128xf32>
    %cst_4 = arith.constant dense<0.000000e+00> : vector<16xf32>
    %10 = vector.multi_reduction <add>, %9, %cst_4 [1] : vector<16x128xf32> to vector<16xf32>
    %11 = vector.shape_cast %10 : vector<16xf32> to vector<16x1xf32>
    %12 = math.log %11 : vector<16x1xf32>
    %13 = arith.addf %6, %12 : vector<16x1xf32>
    %cst_5 = arith.constant 0.000000e+00 : f32
    %14 = vector.broadcast %cst_5 : f32 to vector<16x128xf32>
    %15 = arith.cmpf ogt, %4, %14 : vector<16x128xf32>
    %cst_6 = arith.constant -1.000000e+30 : f32
    %16 = vector.broadcast %cst_6 : f32 to vector<16x128xf32>
    %17 = arith.select %15, %3, %16 : vector<16x128xi1>, vector<16x128xf32>
    %cst_7 = arith.constant dense<0xFF800000> : vector<16xf32>
    %18 = vector.multi_reduction <maximumf>, %17, %cst_7 [1] : vector<16x128xf32> to vector<16xf32>
    %19 = vector.shape_cast %18 : vector<16xf32> to vector<16x1xf32>
    %20 = vector.broadcast %19 : vector<16x1xf32> to vector<16x128xf32>
    %21 = arith.subf %3, %20 : vector<16x128xf32>
    %22 = math.exp %21 : vector<16x128xf32>
    %cst_8 = arith.constant 0.000000e+00 : f32
    %23 = vector.broadcast %cst_8 : f32 to vector<16x128xf32>
    %24 = arith.select %15, %22, %23 : vector<16x128xi1>, vector<16x128xf32>
    %25 = arith.mulf %4, %24 : vector<16x128xf32>
    %cst_9 = arith.constant dense<0.000000e+00> : vector<16xf32>
    %26 = vector.multi_reduction <add>, %25, %cst_9 [1] : vector<16x128xf32> to vector<16xf32>
    %27 = vector.shape_cast %26 : vector<16xf32> to vector<16x1xf32>
    %28 = math.log %27 : vector<16x1xf32>
    %29 = arith.addf %19, %28 : vector<16x1xf32>
    %30 = arith.subf %13, %29 : vector<16x1xf32>
    %cst_10 = arith.constant -5.000000e+01 : f32
    %cst_11 = arith.constant 5.000000e+01 : f32
    %31 = vector.broadcast %cst_10 : f32 to vector<16x128xf32>
    %32 = arith.maximumf %31, %3 : vector<16x128xf32>
    %33 = vector.broadcast %cst_11 : f32 to vector<16x128xf32>
    %34 = arith.minimumf %33, %32 : vector<16x128xf32>
    %35 = math.absf %34 : vector<16x128xf32>
    %cst_12 = arith.constant 0.000000e+00 : f32
    %36 = vector.broadcast %cst_12 : f32 to vector<16x128xf32>
    %37 = arith.subf %36, %35 : vector<16x128xf32>
    %38 = math.exp %37 : vector<16x128xf32>
    %cst_13 = arith.constant 0.000000e+00 : f32
    %39 = vector.broadcast %cst_13 : f32 to vector<16x128xf32>
    %40 = arith.maximumf %34, %39 : vector<16x128xf32>
    %41 = arith.mulf %34, %4 : vector<16x128xf32>
    %42 = arith.subf %40, %41 : vector<16x128xf32>
    %43 = math.log1p %38 : vector<16x128xf32>
    %44 = arith.addf %42, %43 : vector<16x128xf32>
    %cst_14 = arith.constant dense<0.000000e+00> : vector<16xf32>
    %45 = vector.multi_reduction <add>, %44, %cst_14 [1] : vector<16x128xf32> to vector<16xf32>
    %46 = vector.shape_cast %45 : vector<16xf32> to vector<16x1xf32>
    %c0_15 = arith.constant 0 : index
    %c0_16 = arith.constant 0 : index
    %47 = vector.load %arg5[%c0_15, %c0_16] : memref<16x1xf32, #tpu.memory_space<vmem>>, vector<16x1xf32>
    %48 = arith.addf %47, %30 : vector<16x1xf32>
    %c0_17 = arith.constant 0 : index
    %c0_18 = arith.constant 0 : index
    %49 = vector.load %arg5[%c0_17, %c0_18] : memref<16x1xf32, #tpu.memory_space<vmem>>, vector<16x1xf32>
    tpu.vector_store %arg5[%c0_17, %c0_18], %48 {strides = array<i32>} : memref<16x1xf32, #tpu.memory_space<vmem>>, vector<16x1xf32>,
    %c0_19 = arith.constant 0 : index
    %c0_20 = arith.constant 0 : index
    %50 = vector.load %arg6[%c0_19, %c0_20] : memref<16x1xf32, #tpu.memory_space<vmem>>, vector<16x1xf32>
    %51 = arith.addf %50, %46 : vector<16x1xf32>
    %c0_21 = arith.constant 0 : index
    %c0_22 = arith.constant 0 : index
    %52 = vector.load %arg6[%c0_21, %c0_22] : memref<16x1xf32, #tpu.memory_space<vmem>>, vector<16x1xf32>
    tpu.vector_store %arg6[%c0_21, %c0_22], %51 {strides = array<i32>} : memref<16x1xf32, #tpu.memory_space<vmem>>, vector<16x1xf32>,
    %c0_i32_23 = arith.constant 0 : i32
    %53 = arith.cmpi eq, %arg1, %c0_i32_23 : i32
    %54 = arith.extui %53 : i1 to i32
    %c0_i32_24 = arith.constant 0 : i32
    %55 = arith.cmpi ne, %54, %c0_i32_24 : i32
    scf.if %55 {
      %c0_25 = arith.constant 0 : index
      %c0_26 = arith.constant 0 : index
      %56 = vector.load %arg5[%c0_25, %c0_26] : memref<16x1xf32, #tpu.memory_space<vmem>>, vector<16x1xf32>
      %57 = vector.shape_cast %56 : vector<16x1xf32> to vector<1x16x1xf32>
      %cst_27 = arith.constant dense<0.000000e+00> : vector<1xf32>
      %58 = vector.multi_reduction <add>, %57, %cst_27 [1, 2] : vector<1x16x1xf32> to vector<1xf32>
      %59 = vector.shape_cast %58 : vector<1xf32> to vector<1x1x1xf32>
      %60 = vector.extract %59[0, 0, 0] : f32 from vector<1x1x1xf32>
      %c0_28 = arith.constant 0 : index
      %c0_29 = arith.constant 0 : index
      %61 = memref.load %arg4[%c0_28, %c0_29] : memref<1x2xf32, #tpu.memory_space<smem>>
      memref.store %60, %arg4[%c0_28, %c0_29] : memref<1x2xf32, #tpu.memory_space<smem>>
      %c0_30 = arith.constant 0 : index
      %c0_31 = arith.constant 0 : index
      %62 = vector.load %arg6[%c0_30, %c0_31] : memref<16x1xf32, #tpu.memory_space<vmem>>, vector<16x1xf32>
      %63 = vector.shape_cast %62 : vector<16x1xf32> to vector<1x16x1xf32>
      %cst_32 = arith.constant dense<0.000000e+00> : vector<1xf32>
      %64 = vector.multi_reduction <add>, %63, %cst_32 [1, 2] : vector<1x16x1xf32> to vector<1xf32>
      %65 = vector.shape_cast %64 : vector<1xf32> to vector<1x1x1xf32>
      %66 = vector.extract %65[0, 0, 0] : f32 from vector<1x1x1xf32>
      %c0_33 = arith.constant 0 : index
      %c1 = arith.constant 1 : index
      %67 = memref.load %arg4[%c0_33, %c1] : memref<1x2xf32, #tpu.memory_space<smem>>
      memref.store %66, %arg4[%c0_33, %c1] : memref<1x2xf32, #tpu.memory_space<smem>>
    } else {
    }
    return
  }
  func.func @transform_0(%arg0: i32, %arg1: i32) -> (i32, i32) {
    %c1_i32 = arith.constant 1 : i32
    %0 = arith.muli %arg0, %c1_i32 : i32
    %1 = arith.addi %0, %arg1 : i32
    %c0_i32 = arith.constant 0 : i32
    %c0_i32_0 = arith.constant 0 : i32
    return %1, %c0_i32 : i32, i32
  }
  func.func @transform_1(%arg0: i32, %arg1: i32) -> (i32, i32) {
    %c1_i32 = arith.constant 1 : i32
    %0 = arith.muli %arg0, %c1_i32 : i32
    %1 = arith.addi %0, %arg1 : i32
    %c0_i32 = arith.constant 0 : i32
    %c0_i32_0 = arith.constant 0 : i32
    return %1, %c0_i32 : i32, i32
  }
  func.func @transform_2(%arg0: i32, %arg1: i32) -> (i32, i32) {
    %c0_i32 = arith.constant 0 : i32
    %c0_i32_0 = arith.constant 0 : i32
    return %arg0, %c0_i32 : i32, i32
  }
}

</mosaic_0001>

<llo_original>
// kernel: tpu_custom_call.1
$region0: #{tpu_custom_call.1}
  #allocation0 [shape = 'u32[]', space=smem, size = 0x4, offset = 0x4, fixed_abs, tag = 'smem constant byte address 0x4 - core index']
  #allocation1 [shape = 'u32[144,128]{1,0:T(1,128)}', space=vmem, size = 0x12000, scoped, tag = 'internal scratch']
  #allocation2 [shape = 'f32[16,1]{1,0:T(8,128)}', space=vmem, size = 0x2000, scoped, tag = 'scratch operand']
  #allocation3 [shape = 'f32[16,1]{1,0:T(8,128)}', space=vmem, size = 0x2000, scoped, tag = 'scratch operand']
  %s0 = inlined_call_operand.hbm [shape: f32[16,128], index: 0, kind: input, shape index: {}]
  %s1 = inlined_call_operand.hbm [shape: f32[16,128], index: 1, kind: input, shape index: {}]
  %s2 = inlined_call_operand.hbm [shape: f32[1,2], index: 2, kind: output, shape index: {}]
  %s3 = sld [smem:[#allocation0]]
  $region34: #{tpu_custom_call.1} parent=0
    _
  %s5 = ssub.s32 1, %s3
  %s6 = scalar_select 0, %s5, %s3
  $region1: #{tpu_custom_call.1} parent=0
    #allocation4 [shape = 'u8[8192]{0}', space=vmem, size = 0x2000, scoped, tag = 'input window, operand 0, single buffered']
    #allocation5 [shape = 's32[1]{0}', space=sflag, size = 0x4, scoped, tag = 'scoped memory for tpu_custom_call.1']
    #allocation6 [shape = 's32[1]{0}', space=sflag, size = 0x4, scoped, tag = 'scoped memory for tpu_custom_call.1']
    #allocation7 [shape = 'u8[8192]{0}', space=vmem, size = 0x2000, scoped, tag = 'input window, operand 1, single buffered']
    #allocation8 [shape = 's32[1]{0}', space=sflag, size = 0x4, scoped, tag = 'scoped memory for tpu_custom_call.1']
    #allocation9 [shape = 'u8[512]{0}', space=smem, size = 0x200, scoped, tag = 'output window, operand 0, single buffered']
    %7 = vsyncpa [#allocation5], 0
    %8 = vsyncpa [#allocation8], 0
    %9 = vsyncpa [#allocation6], 0
    // Predicated region
    $region2: #{tpu_custom_call.1} parent=1 // pred_check
      _
    $region3: #{tpu_custom_call.1} parent=1 // pred_check_branch
      %11 = sbr.rel (0) target = $region5
    $region4: #{tpu_custom_call.1} parent=1 // pred_region
      %s12 = sadd.s32 0, 0
      %s13 = smul.u32 2, %s12
      %s15 = ssub.s32 256, 256
      %16 = vsyncadd [#allocation5], %s15
      %s17 = smul.addr %s13, 128
      %s18 = scalar_lea.hbm %s0, %s17
      %s19 = sshll.u32 [#allocation4], 4
      %s20 = int_to_ptr.vmem [resolvable:$true] %s19
      %25 = dma.hbm_to_vmem [thread:$0]  %s18, 256, %s20, [#allocation5], 128, 128, 8
    $region5: #{tpu_custom_call.1} parent=1 // pred_fallthru
      _
    // Predicated region
    $region6: #{tpu_custom_call.1} parent=1 // pred_check
      _
    $region7: #{tpu_custom_call.1} parent=1 // pred_check_branch
      %27 = sbr.rel (0) target = $region9
    $region8: #{tpu_custom_call.1} parent=1 // pred_region
      %s28 = sadd.s32 0, 0
      %s29 = smul.u32 2, %s28
      %s31 = ssub.s32 256, 256
      %32 = vsyncadd [#allocation8], %s31
      %s33 = smul.addr %s29, 128
      %s34 = scalar_lea.hbm %s1, %s33
      %s35 = sshll.u32 [#allocation7], 4
      %s36 = int_to_ptr.vmem [resolvable:$true] %s35
      %41 = dma.hbm_to_vmem [thread:$0]  %s34, 256, %s36, [#allocation8], 128, 128, 8
    $region9: #{tpu_custom_call.1} parent=1 // pred_fallthru
      _
    // Predicated region
    $region10: #{tpu_custom_call.1} parent=1 // pred_check
      _
    $region11: #{tpu_custom_call.1} parent=1 // pred_check_branch
      %43 = sbr.rel (0) target = $region13
    $region12: #{tpu_custom_call.1} parent=1 // pred_region
      %44 = dma.done [#allocation5], 256
    $region13: #{tpu_custom_call.1} parent=1 // pred_fallthru
      _
    // Predicated region
    $region14: #{tpu_custom_call.1} parent=1 // pred_check
      _
    $region15: #{tpu_custom_call.1} parent=1 // pred_check_branch
      %46 = sbr.rel (0) target = $region17
    $region16: #{tpu_custom_call.1} parent=1 // pred_region
      %47 = dma.done [#allocation8], 256
    $region17: #{tpu_custom_call.1} parent=1 // pred_fallthru
      _
    %s48 = sadd.s32 0, 0
    %s49 = smul.u32 2, %s48
    %s50 = sadd.s32 0, 0
    %s51 = smul.u32 2, %s50
    %p52 = scmp.eq.s32.totalorder 0, 0
    // Predicated region
    $region18: #{tpu_custom_call.1} parent=1 // pred_check
      %p53 = pneg %p52
    $region19: #{tpu_custom_call.1} parent=1 // pred_check_branch
      %55 = sbr.rel (%p53) target = $region21
    $region20: #{tpu_custom_call.1} parent=1 // pred_region
      %vm56 = vcmask 7168
      %57 = vst.msk [vmem:[#allocation2] sm:$0xff] %vm56, 0.0
      %58 = vst.msk [vmem:[#allocation2 + $0x8] sm:$0xff] %vm56, 0.0
      %59 = vst.msk [vmem:[#allocation3] sm:$0xff] %vm56, 0.0
      %60 = vst.msk [vmem:[#allocation3 + $0x8] sm:$0xff] %vm56, 0.0
    $region21: #{tpu_custom_call.1} parent=1 // pred_fallthru
      _
    %v61 = vld [vmem:[#allocation4] sm:$0xff]
    %v62 = vld [vmem:[#allocation4 + $0x8] sm:$0xff]
    %v63 = vld [vmem:[#allocation7] sm:$0xff]
    %v64 = vld [vmem:[#allocation7 + $0x8] sm:$0xff]
    %65 = vmax.xlane.f32.xlu0 %v61
    %v66 = vpop.xlane.xlu0 %65
    %67 = vmax.xlane.f32.xlu0 %v62
    %v68 = vpop.xlane.xlu0 %67
    %v69 = vsub.f32 %v61, %v66
    %v70 = vsub.f32 %v62, %v68
    %v71 = vmul.f32 %v69, 1.442695
    %v72 = vpow.pop %v71
    %v73 = vmul.f32 %v70, 1.442695
    %v74 = vpow.pop %v73
    %75 = vadd.xlane.f32.xlu0 %v72
    %v76 = vpop.xlane.xlu0 %75
    %77 = vadd.xlane.f32.xlu0 %v74
    %v78 = vpop.xlane.xlu0 %77
    %v79 = vlog2.pop %v76
    %v80 = vmul.f32 %v79, 0.6931472
    %v81 = vlog2.pop %v78
    %v82 = vmul.f32 %v81, 0.6931472
    %v83 = vadd.f32 %v66, %v80
    %v84 = vadd.f32 %v68, %v82
    %vm85 = vcmp.gt.f32.partialorder %v63, 0.0
    %vm86 = vcmp.gt.f32.partialorder %v64, 0.0
    %v87 = vsel %vm85, %v61, -1e+30
    %v88 = vsel %vm86, %v62, -1e+30
    %89 = vmax.xlane.f32.xlu0 %v87
    %v90 = vpop.xlane.xlu0 %89
    %91 = vmax.xlane.f32.xlu0 %v88
    %v92 = vpop.xlane.xlu0 %91
    %v93 = vsub.f32 %v61, %v90
    %v94 = vsub.f32 %v62, %v92
    %v95 = vmul.f32 %v93, 1.442695
    %v96 = vpow.pop %v95
    %v97 = vmul.f32 %v94, 1.442695
    %v98 = vpow.pop %v97
    %v99 = vsel %vm85, %v96, 0.0
    %v100 = vsel %vm86, %v98, 0.0
    %v101 = vmul.f32 %v63, %v99
    %v102 = vmul.f32 %v64, %v100
    %103 = vadd.xlane.f32.xlu0 %v101
    %v104 = vpop.xlane.xlu0 %103
    %105 = vadd.xlane.f32.xlu0 %v102
    %v106 = vpop.xlane.xlu0 %105
    %v107 = vlog2.pop %v104
    %v108 = vmul.f32 %v107, 0.6931472
    %v109 = vlog2.pop %v106
    %v110 = vmul.f32 %v109, 0.6931472
    %v111 = vadd.f32 %v90, %v108
    %v112 = vadd.f32 %v92, %v110
    %v113 = vsub.f32 %v83, %v111
    %v114 = vsub.f32 %v84, %v112
    %v115 = vmax.f32 %v61, -50.0
    %v116 = vmax.f32 %v62, -50.0
    %v117 = vmin.f32 %v115, 50.0
    %v118 = vmin.f32 %v116, 50.0
    %v119 = vand.u32 2147483647, %v117
    %v120 = vand.u32 2147483647, %v118
    %v121 = vsub.f32 0.0, %v119
    %v122 = vsub.f32 0.0, %v120
    %v123 = vmul.f32 %v121, 1.442695
    %v124 = vpow.pop %v123
    %v125 = vmul.f32 %v122, 1.442695
    %v126 = vpow.pop %v125
    %v127 = vmax.f32 %v117, 0.0
    %v128 = vmax.f32 %v118, 0.0
    %v129 = vmul.f32 %v117, %v63
    %v130 = vmul.f32 %v118, %v64
    %v131 = vsub.f32 %v127, %v129
    %v132 = vsub.f32 %v128, %v130
    %v133 = vadd.f32 %v124, 1.0
    %v134 = vlog2.pop %v133
    %v135 = vmul.f32 %v134, 0.6931472
    %v136 = vmul.f32 -0.5, %v124
    %v137 = vadd.f32 %v136, 1.0
    %v138 = vmul.f32 %v137, %v124
    %v139 = vand.u32 2147483647, %v124
    %vm140 = vcmp.lt.f32.partialorder %v139, 0.0004427343
    %v141 = vsel %vm140, %v138, %v135
    %v142 = vadd.f32 %v126, 1.0
    %v143 = vlog2.pop %v142
    %v144 = vmul.f32 %v143, 0.6931472
    %v145 = vmul.f32 -0.5, %v126
    %v146 = vadd.f32 %v145, 1.0
    %v147 = vmul.f32 %v146, %v126
    %v148 = vand.u32 2147483647, %v126
    %vm149 = vcmp.lt.f32.partialorder %v148, 0.0004427343
    %v150 = vsel %vm149, %v147, %v144
    %v151 = vadd.f32 %v131, %v141
    %v152 = vadd.f32 %v132, %v150
    %153 = vadd.xlane.f32.xlu0 %v151
    %v154 = vpop.xlane.xlu0 %153
    %155 = vadd.xlane.f32.xlu0 %v152
    %v156 = vpop.xlane.xlu0 %155
    %v157 = vld [vmem:[#allocation2] sm:$0xff]
    %v158 = vld [vmem:[#allocation2 + $0x8] sm:$0xff]
    %v159 = vadd.f32 %v157, %v113
    %v160 = vadd.f32 %v158, %v114
    %vm161 = vcmask 7168
    %162 = vst.msk [vmem:[#allocation2] sm:$0xff] %vm161, %v159
    %163 = vst.msk [vmem:[#allocation2 + $0x8] sm:$0xff] %vm161, %v160
    %v164 = vld [vmem:[#allocation3] sm:$0xff]
    %v165 = vld [vmem:[#allocation3 + $0x8] sm:$0xff]
    %v166 = vadd.f32 %v164, %v154
    %v167 = vadd.f32 %v165, %v156
    %168 = vst.msk [vmem:[#allocation3] sm:$0xff] %vm161, %v166
    %169 = vst.msk [vmem:[#allocation3 + $0x8] sm:$0xff] %vm161, %v167
    // Predicated region
    $region22: #{tpu_custom_call.1} parent=1 // pred_check
      %p170 = pneg %p52
    $region23: #{tpu_custom_call.1} parent=1 // pred_check_branch
      %172 = sbr.rel (%p170) target = $region25
    $region24: #{tpu_custom_call.1} parent=1 // pred_region
      %v173 = vld [vmem:[#allocation2] sm:$0xff]
      %v174 = vld [vmem:[#allocation2 + $0x8] sm:$0xff]
      %v175 = vsel %vm161, %v173, 0.0
      %v176 = vsel %vm161, %v174, 0.0
      %v177 = vadd.f32 %v175, %v176
      %178 = vadd.xlane.f32.xlu0 %v177
      %v179 = vpop.xlane.xlu0 %178
      %v180 = vrot.slane %v179, 4
      %v181 = vadd.f32 %v179, %v180
      %v182 = vrot.slane %v181, 2
      %v183 = vadd.f32 %v181, %v182
      %v184 = vrot.slane %v183, 1
      %v185 = vadd.f32 %v183, %v184
      %s186 = vtos %v185
      %s187 = scalar_lea.smem [#allocation9], 0
      %188 = sst [smem:[%s187]] %s186
      %v189 = vld [vmem:[#allocation3] sm:$0xff]
      %v190 = vld [vmem:[#allocation3 + $0x8] sm:$0xff]
      %v191 = vsel %vm161, %v189, 0.0
      %v192 = vsel %vm161, %v190, 0.0
      %v193 = vadd.f32 %v191, %v192
      %194 = vadd.xlane.f32.xlu0 %v193
      %v195 = vpop.xlane.xlu0 %194
      %v196 = vrot.slane %v195, 4
      %v197 = vadd.f32 %v195, %v196
      %v198 = vrot.slane %v197, 2
      %v199 = vadd.f32 %v197, %v198
      %v200 = vrot.slane %v199, 1
      %v201 = vadd.f32 %v199, %v200
      %s202 = vtos %v201
      %s203 = scalar_lea.smem [#allocation9], 1
      %204 = sst [smem:[%s203]] %s202
    $region25: #{tpu_custom_call.1} parent=1 // pred_fallthru
      _
    // Predicated region
    $region26: #{tpu_custom_call.1} parent=1 // pred_check
      _
    $region27: #{tpu_custom_call.1} parent=1 // pred_check_branch
      %206 = sbr.rel (0) target = $region29
    $region28: #{tpu_custom_call.1} parent=1 // pred_region
      %s208 = ssub.s32 16, 16
      %209 = vsyncadd [#allocation6], %s208
      %212 = dma.smem_to_hbm [#allocation9], 16, %s2, [#allocation6]
    $region29: #{tpu_custom_call.1} parent=1 // pred_fallthru
      _
    // Predicated region
    $region30: #{tpu_custom_call.1} parent=1 // pred_check
      _
    $region31: #{tpu_custom_call.1} parent=1 // pred_check_branch
      %214 = sbr.rel (0) target = $region33
    $region32: #{tpu_custom_call.1} parent=1 // pred_region
      %215 = dma.done [#allocation6], 16
    $region33: #{tpu_custom_call.1} parent=1 // pred_fallthru
      _
    %216 = sfence
    %217 = vsyncpa [#allocation5], 1
    %218 = vsyncpa [#allocation8], 1
    %219 = vsyncpa [#allocation6], 1

</llo_original>
